<compile_context>
chip_gen: v6e
topology: v6e:2x2x1
jax: 0.10.0
libtpu: 0.0.40
codegen_flags: <defaults>
</compile_context>

<pallas_src>
import functools

import jax
import jax.numpy as jnp
from jax import lax
from jax.experimental import pallas as pl
from jax.experimental.pallas import tpu as pltpu


# ------------------------------- helpers ------------------------------------

def _cdiv(a, b):
    return -(-a // b)


def _round_up(x, m):
    return ((x + m - 1) // m) * m


def _pad2(a, rows, cols):
    r, c = a.shape
    if r == rows and c == cols:
        return a
    return jnp.pad(a, ((0, rows - r), (0, cols - c)))


def _feature_multiple():
    """MXU-native lane multiple: 256 on v6e/v7x (256x256 MXU), 128 otherwise."""
    try:
        kind = jax.devices()[0].device_kind.lower()
    except Exception:
        return 128
    return 256 if ("v6" in kind or "v7" in kind) else 128


def _round_feature(d, mult):
    # dims <=128 get the minimum lane-dense pad; larger dims use the MXU-native
    # multiple (256 on v6e/v7x, 128 on v5e).
    return _round_up(d, 128) if d <= 128 else _round_up(d, mult)


# ----------------------------- Pallas kernel ---------------------------------

def _resblock_kernel(x_ref, w_first_ref, b0_ref, w1_ref, b1_ref, o_ref, *,
                     size_h_p, has_shortcut, row_chunk, n_chunks):
    # Resident operands: read once per grid step (weights stay in VMEM).
    w_first = w_first_ref[...]
    w1 = w1_ref[...]
    b0 = b0_ref[...]
    b1 = b1_ref[...]

    def chunk_body(c, carry):
        # Row sub-tiles: the VPU epilogue (bias/ReLU/cast) of chunk c overlaps
        # the MXU matmuls of chunk c+1, and the live f32 intermediate is bounded
        # to row_chunk x (Dh_p [+ Dout_p]).
        r0 = pl.multiple_of(c * row_chunk, row_chunk)
        x = x_ref[pl.ds(r0, row_chunk), :]
        xb = x.astype(w_first.dtype)                    # f32 -> bf16 fused here
        hs = jnp.dot(xb, w_first, preferred_element_type=jnp.float32)
        h = jnp.maximum(hs[:, :size_h_p] + b0, 0.0)     # fc_0 bias + ReLU (f32)
        r = jnp.dot(h.astype(w1.dtype), w1,
                    preferred_element_type=jnp.float32) + b1   # fc_1
        if has_shortcut:
            x_s = hs[:, size_h_p:]                      # x @ Ws (bias-free)
        else:
            x_s = x.astype(jnp.float32)                 # identity skip in f32
        o_ref[pl.ds(r0, row_chunk), :] = jnp.maximum(x_s + r, 0.0).astype(o_ref.dtype)
        return carry

    lax.fori_loop(0, n_chunks, chunk_body, 0, unroll=True)


# --------------------------- one-time param prep ------------------------------

def prepare_resnet_block_params(params, *, weight_dtype=jnp.bfloat16):
    """Pad / cast / concat weights ONCE (hoist out of the per-step forward).

    params: 'w0' (size_in, size_h), 'b0' (1, size_h),
            'w1' (size_h, size_out), 'b1' (1, size_out),
            optional 'ws' (size_in, size_out) when size_in != size_out.
    """
    size_in, size_h = params["w0"].shape
    size_out = params["w1"].shape[1]
    has_shortcut = "ws" in params
    mult = _feature_multiple()
    size_in_p = _round_feature(size_in, mult)
    size_h_p = _round_feature(size_h, mult)
    size_out_p = _round_feature(size_out, mult)

    w0 = _pad2(params["w0"], size_in_p, size_h_p).astype(weight_dtype)
    b0 = _pad2(params["b0"], 1, size_h_p).astype(jnp.float32)
    w1 = _pad2(params["w1"], size_h_p, size_out_p).astype(weight_dtype)
    b1 = _pad2(params["b1"], 1, size_out_p).astype(jnp.float32)
    if has_shortcut:
        ws = _pad2(params["ws"], size_in_p, size_out_p).astype(weight_dtype)
        w_first = jnp.concatenate([w0, ws], axis=1)     # x @ [W0 | Ws]: one MXU pass
    else:
        w_first = w0

    return dict(w_first=w_first, b0=b0, w1=w1, b1=b1,
                size_in=size_in, size_out=size_out,
                size_in_p=size_in_p, size_h_p=size_h_p, size_out_p=size_out_p,
                has_shortcut=has_shortcut)


# -------------------------------- wrapper ------------------------------------

def resnet_block_forward(x, params, *, tile_n=256, out_dtype=None):
    """Fused ResnetBlock forward.

    x: (N, size_in) float32 (or bf16)
    params: prepared dict from prepare_resnet_block_params(), or raw
            {'w0','b0','w1','b1'[, 'ws']} (auto-prepared; hoist prep for perf).
    out_dtype: set to jnp.bfloat16 if downstream accepts bf16 (halves writeback).
    """
    if "w_first" not in params:
        params = prepare_resnet_block_params(params)

    n, size_in = x.shape
    assert size_in == params["size_in"], "x feature dim mismatch"
    size_out = params["size_out"]
    size_in_p = params["size_in_p"]
    size_h_p = params["size_h_p"]
    size_out_p = params["size_out_p"]
    has_shortcut = params["has_shortcut"]
    w_first, b0, w1, b1 = params["w_first"], params["b0"], params["w1"], params["b1"]
    out_dtype = jnp.dtype(x.dtype if out_dtype is None else out_dtype)

    # Balanced batch tiles: bound padding waste to 16-row granularity instead of
    # rounding N up to a full tile_n multiple.
    n8 = _round_up(max(n, 8), 8)
    nt = _cdiv(n8, tile_n)
    tn = _round_up(_cdiv(n8, nt), 16)
    n_p = nt * tn
    grid = (nt,)

    row_chunk = 128 if (tn >= 256 and tn % 128 == 0) else tn
    n_chunks = tn // row_chunk

    # No per-call dtype cast of x: bf16 cast is fused in-kernel. Pad only if needed.
    x_p = _pad2(x, n_p, size_in_p)

    kernel = functools.partial(
        _resblock_kernel, size_h_p=size_h_p, has_shortcut=has_shortcut,
        row_chunk=row_chunk, n_chunks=n_chunks)

    # VMEM budget: x/out double-buffered, weights budgeted for worst-case double
    # buffering (covers the Buffered(1) fallback), plus one row-chunk of f32
    # intermediates; 2x margin, floor 16 MiB.
    w_bytes = (w_first.size * w_first.dtype.itemsize
               + w1.size * w1.dtype.itemsize
               + b0.size * b0.dtype.itemsize + b1.size * b1.dtype.itemsize)
    inter_cols = w_first.shape[1] + 2 * size_out_p
    est = (2 * tn * size_in_p * x_p.dtype.itemsize
           + 2 * tn * size_out_p * out_dtype.itemsize
           + 2 * w_bytes
           + row_chunk * inter_cols * 4)
    vmem_limit = int(min(max(2 * est + (4 << 20), 16 << 20), 100 << 20))

    shortcut_flops = 2 * n_p * size_in_p * size_out_p if has_shortcut else 0
    flops = int(2 * n_p * size_in_p * size_h_p
                + 2 * n_p * size_h_p * size_out_p + shortcut_flops)
    bytes_accessed = int(x_p.size * x_p.dtype.itemsize + w_bytes
                         + n_p * size_out_p * out_dtype.itemsize)

    def _call(single_buffer_weights):
        if single_buffer_weights:
            # Constant block index -> keep ONE resident VMEM copy instead of the
            # default double buffer (halves resident-weight VMEM).
            res = lambda shape: pl.BlockSpec(shape, lambda i: (0, 0),
                                             pipeline_mode=pl.Buffered(1))
        else:
            res = lambda shape: pl.BlockSpec(shape, lambda i: (0, 0))
        return pl.pallas_call(
            kernel,
            out_shape=jax.ShapeDtypeStruct((n_p, size_out_p), out_dtype),
            grid_spec=pltpu.PrefetchScalarGridSpec(
                num_scalar_prefetch=0,
                grid=grid,
                in_specs=[
                    pl.BlockSpec((tn, size_in_p), lambda i: (i, 0)),  # x: tiled N
                    res(w_first.shape),                               # [W0|Ws] resident
                    res((1, size_h_p)),                               # b0 resident
                    res((size_h_p, size_out_p)),                      # W1 resident
                    res((1, size_out_p)),                             # b1 resident
                ],
                out_specs=pl.BlockSpec((tn, size_out_p), lambda i: (i, 0)),
            ),
            compiler_params=pltpu.CompilerParams(
                dimension_semantics=("parallel",),
                vmem_limit_bytes=vmem_limit),
            cost_estimate=pl.CostEstimate(
                flops=flops, transcendentals=0, bytes_accessed=bytes_accessed),
        )(x_p, w_first, b0, w1, b1)

    try:
        out_p = _call(True)
    except Exception:
        # pl.Buffered(1) pipeline_mode unsupported on this jax/backend combo:
        # fall back to default buffering (correct, just uses more VMEM).
        out_p = _call(False)

    return out_p[:n, :size_out]


# ------------------------- deterministic param init --------------------------

def init_resnet_block_params(key, size_in, size_out=None, size_h=None):
    """Mirror ResnetBlock.__init__: kaiming fan_in for fc_0 / shortcut weights,
    zeros for fc_1 weight, zero biases. Weights stored (in, out)."""
    if size_out is None:
        size_out = size_in
    if size_h is None:
        size_h = min(size_in, size_out)

    k0, ks = jax.random.split(key)
    w0 = jax.random.normal(k0, (size_in, size_h), jnp.float32) * jnp.sqrt(2.0 / size_in)
    b0 = jnp.zeros((1, size_h), jnp.float32)
    w1 = jnp.zeros((size_h, size_out), jnp.float32)   # nn.init.zeros_(fc_1.weight)
    b1 = jnp.zeros((1, size_out), jnp.float32)

    params = {"w0": w0, "b0": b0, "w1": w1, "b1": b1}
    if size_in != size_out:
        params["ws"] = jax.random.normal(ks, (size_in, size_out), jnp.float32) * jnp.sqrt(
            2.0 / size_in)
    return params


# -------------------------------- reference ----------------------------------

def resnet_block_ref(x, params):
    h = jnp.maximum(x @ params["w0"] + params["b0"], 0.0)
    r = h @ params["w1"] + params["b1"]
    x_s = x @ params["ws"] if "ws" in params else x
    return jnp.maximum(x_s + r, 0.0)


# ---------------------------------- main --------------------------------------

if __name__ == "__main__":
    key = jax.random.PRNGKey(0)
    ks = jax.random.split(key, 8)

    # bf16 MXU path vs f32 reference -> loose tolerances.
    TOL = dict(atol=1e-1, rtol=1e-1)

    # Case 1: size_in == size_out (identity shortcut), faithful module init.
    n, size_in = 8, 32
    x = jax.random.normal(ks[0], (n, size_in), jnp.float32)
    raw1 = init_resnet_block_params(ks[1], size_in)
    prep1 = prepare_resnet_block_params(raw1)          # weight prep hoisted (once)
    out = resnet_block_forward(x, prep1)
    jax.block_until_ready(out)
    assert out.shape == (n, size_in)
    assert jnp.allclose(out, resnet_block_ref(x, raw1), **TOL), "case1 mismatch"

    # Case 2: size_in != size_out (linear shortcut), fc_1 randomized so both
    # matmuls are exercised; multi-tile grid + in-kernel row chunking.
    n2, size_in2, size_out2 = 1024, 48, 24
    x2 = jax.random.normal(ks[2], (n2, size_in2), jnp.float32)
    raw2 = init_resnet_block_params(ks[3], size_in2, size_out2)
    raw2["w1"] = jax.random.normal(ks[4], raw2["w1"].shape, jnp.float32) * 0.3
    raw2["b1"] = jax.random.normal(ks[5], raw2["b1"].shape, jnp.float32) * 0.1
    prep2 = prepare_resnet_block_params(raw2)
    out2 = resnet_block_forward(x2, prep2, tile_n=256)
    jax.block_until_ready(out2)
    assert jnp.allclose(out2, resnet_block_ref(x2, raw2), **TOL), "case2 mismatch"

    # Case 3: identity shortcut with randomized fc_1 and uneven N -> exercises
    # the residual add, balanced-tile selection and raw-param auto-prep path.
    n3 = 520
    x3 = jax.random.normal(ks[6], (n3, size_in), jnp.float32)
    raw3 = init_resnet_block_params(ks[7], size_in)
    raw3["w1"] = jax.random.normal(ks[4], raw3["w1"].shape, jnp.float32) * 0.3
    out3 = resnet_block_forward(x3, raw3)
    jax.block_until_ready(out3)
    assert jnp.allclose(out3, resnet_block_ref(x3, raw3), **TOL), "case3 mismatch"

    print("KERNEL_OK")
</pallas_src>

<mosaic_0001>
module attributes {stable_mosaic.version = 11 : i64} {
  func.func @_resblock_kernel(%arg0: i32, %arg1: memref<16x128xf32, #tpu.memory_space<vmem>>, %arg2: memref<128x128xbf16, #tpu.memory_space<vmem>>, %arg3: memref<1x128xf32, #tpu.memory_space<vmem>>, %arg4: memref<128x128xbf16, #tpu.memory_space<vmem>>, %arg5: memref<1x128xf32, #tpu.memory_space<vmem>>, %arg6: memref<16x128xf32, #tpu.memory_space<vmem>>) attributes {dimension_semantics = [#tpu.dimension_semantics<parallel>], iteration_bounds = array<i64: 1>, scalar_prefetch = 0 : i64, scratch_operands = 0 : i64, tpu.core_type = #tpu.core_type<tc>, window_params = [{transform_indices = @transform_0, window_bounds = array<i64: 16, 128>}, {pipeline_mode = #tpu.pipeline_mode<synchronous>, transform_indices = @transform_1, window_bounds = array<i64: 128, 128>}, {pipeline_mode = #tpu.pipeline_mode<synchronous>, transform_indices = @transform_2, window_bounds = array<i64: 1, 128>}, {pipeline_mode = #tpu.pipeline_mode<synchronous>, transform_indices = @transform_3, window_bounds = array<i64: 128, 128>}, {pipeline_mode = #tpu.pipeline_mode<synchronous>, transform_indices = @transform_4, window_bounds = array<i64: 1, 128>}, {transform_indices = @transform_5, window_bounds = array<i64: 16, 128>}]} {
    %c0 = arith.constant 0 : index
    %c0_0 = arith.constant 0 : index
    %0 = vector.load %arg2[%c0, %c0_0] : memref<128x128xbf16, #tpu.memory_space<vmem>>, vector<128x128xbf16>
    %c0_1 = arith.constant 0 : index
    %c0_2 = arith.constant 0 : index
    %1 = vector.load %arg4[%c0_1, %c0_2] : memref<128x128xbf16, #tpu.memory_space<vmem>>, vector<128x128xbf16>
    %c0_3 = arith.constant 0 : index
    %c0_4 = arith.constant 0 : index
    %2 = vector.load %arg3[%c0_3, %c0_4] : memref<1x128xf32, #tpu.memory_space<vmem>>, vector<1x128xf32>
    %c0_5 = arith.constant 0 : index
    %c0_6 = arith.constant 0 : index
    %3 = vector.load %arg5[%c0_5, %c0_6] : memref<1x128xf32, #tpu.memory_space<vmem>>, vector<1x128xf32>
    %c0_i32 = arith.constant 0 : i32
    %c16_i32 = arith.constant 16 : i32
    %4 = arith.muli %c0_i32, %c16_i32 : i32
    %5 = tpu.assume_multiple %4, 16 : i32
    %6 = arith.index_cast %5 : i32 to index
    %c0_7 = arith.constant 0 : index
    %7 = vector.load %arg1[%6, %c0_7] : memref<16x128xf32, #tpu.memory_space<vmem>>, vector<16x128xf32>
    %8 = arith.truncf %7 : vector<16x128xf32> to vector<16x128xbf16>
    %cst = arith.constant dense<0.000000e+00> : vector<16x128xf32>
    %9 = tpu.matmul %8, %0, %cst {dimension_numbers = #tpu.dot_dimension_numbers<[1], [0], [0], [1], [0, 0, 1, 1], [], []>} : vector<16x128xbf16>, vector<128x128xbf16>, vector<16x128xf32> -> vector<16x128xf32>
    %10 = vector.broadcast %2 : vector<1x128xf32> to vector<16x128xf32>
    %11 = arith.addf %9, %10 : vector<16x128xf32>
    %cst_8 = arith.constant 0.000000e+00 : f32
    %12 = vector.broadcast %cst_8 : f32 to vector<16x128xf32>
    %13 = arith.maximumf %11, %12 : vector<16x128xf32>
    %14 = arith.truncf %13 : vector<16x128xf32> to vector<16x128xbf16>
    %cst_9 = arith.constant dense<0.000000e+00> : vector<16x128xf32>
    %15 = tpu.matmul %14, %1, %cst_9 {dimension_numbers = #tpu.dot_dimension_numbers<[1], [0], [0], [1], [0, 0, 1, 1], [], []>} : vector<16x128xbf16>, vector<128x128xbf16>, vector<16x128xf32> -> vector<16x128xf32>
    %16 = vector.broadcast %3 : vector<1x128xf32> to vector<16x128xf32>
    %17 = arith.addf %15, %16 : vector<16x128xf32>
    %18 = arith.addf %7, %17 : vector<16x128xf32>
    %cst_10 = arith.constant 0.000000e+00 : f32
    %19 = vector.broadcast %cst_10 : f32 to vector<16x128xf32>
    %20 = arith.maximumf %18, %19 : vector<16x128xf32>
    %21 = arith.index_cast %5 : i32 to index
    %c0_11 = arith.constant 0 : index
    %22 = vector.load %arg6[%21, %c0_11] : memref<16x128xf32, #tpu.memory_space<vmem>>, vector<16x128xf32>
    tpu.vector_store %arg6[%21, %c0_11], %20 {strides = array<i32>} : memref<16x128xf32, #tpu.memory_space<vmem>>, vector<16x128xf32>,
    %c1_i32 = arith.constant 1 : i32
    return
  }
  func.func @transform_0(%arg0: i32) -> (i32, i32) {
    %c0_i32 = arith.constant 0 : i32
    %c0_i32_0 = arith.constant 0 : i32
    return %arg0, %c0_i32 : i32, i32
  }
  func.func @transform_1(%arg0: i32) -> (i32, i32) {
    %c0_i32 = arith.constant 0 : i32
    %c0_i32_0 = arith.constant 0 : i32
    %c0_i32_1 = arith.constant 0 : i32
    return %c0_i32, %c0_i32_0 : i32, i32
  }
  func.func @transform_2(%arg0: i32) -> (i32, i32) {
    %c0_i32 = arith.constant 0 : i32
    %c0_i32_0 = arith.constant 0 : i32
    %c0_i32_1 = arith.constant 0 : i32
    return %c0_i32, %c0_i32_0 : i32, i32
  }
  func.func @transform_3(%arg0: i32) -> (i32, i32) {
    %c0_i32 = arith.constant 0 : i32
    %c0_i32_0 = arith.constant 0 : i32
    %c0_i32_1 = arith.constant 0 : i32
    return %c0_i32, %c0_i32_0 : i32, i32
  }
  func.func @transform_4(%arg0: i32) -> (i32, i32) {
    %c0_i32 = arith.constant 0 : i32
    %c0_i32_0 = arith.constant 0 : i32
    %c0_i32_1 = arith.constant 0 : i32
    return %c0_i32, %c0_i32_0 : i32, i32
  }
  func.func @transform_5(%arg0: i32) -> (i32, i32) {
    %c0_i32 = arith.constant 0 : i32
    %c0_i32_0 = arith.constant 0 : i32
    return %arg0, %c0_i32 : i32, i32
  }
}

module attributes {stable_mosaic.version = 11 : i64} {
  func.func @_resblock_kernel(%arg0: i32, %arg1: memref<16x128xf32, #tpu.memory_space<vmem>>, %arg2: memref<128x128xbf16, #tpu.memory_space<vmem>>, %arg3: memref<1x128xf32, #tpu.memory_space<vmem>>, %arg4: memref<128x128xbf16, #tpu.memory_space<vmem>>, %arg5: memref<1x128xf32, #tpu.memory_space<vmem>>, %arg6: memref<16x128xf32, #tpu.memory_space<vmem>>) attributes {dimension_semantics = [#tpu.dimension_semantics<parallel>], iteration_bounds = array<i64: 1>, scalar_prefetch = 0 : i64, scratch_operands = 0 : i64, tpu.core_type = #tpu.core_type<tc>, window_params = [{transform_indices = @transform_0, window_bounds = array<i64: 16, 128>}, {pipeline_mode = #tpu.pipeline_mode<synchronous>, transform_indices = @transform_1, window_bounds = array<i64: 128, 128>}, {pipeline_mode = #tpu.pipeline_mode<synchronous>, transform_indices = @transform_2, window_bounds = array<i64: 1, 128>}, {pipeline_mode = #tpu.pipeline_mode<synchronous>, transform_indices = @transform_3, window_bounds = array<i64: 128, 128>}, {pipeline_mode = #tpu.pipeline_mode<synchronous>, transform_indices = @transform_4, window_bounds = array<i64: 1, 128>}, {transform_indices = @transform_5, window_bounds = array<i64: 16, 128>}]} {
    %c0 = arith.constant 0 : index
    %c0_0 = arith.constant 0 : index
    %0 = vector.load %arg2[%c0, %c0_0] : memref<128x128xbf16, #tpu.memory_space<vmem>>, vector<128x128xbf16>
    %c0_1 = arith.constant 0 : index
    %c0_2 = arith.constant 0 : index
    %1 = vector.load %arg4[%c0_1, %c0_2] : memref<128x128xbf16, #tpu.memory_space<vmem>>, vector<128x128xbf16>
    %c0_3 = arith.constant 0 : index
    %c0_4 = arith.constant 0 : index
    %2 = vector.load %arg3[%c0_3, %c0_4] : memref<1x128xf32, #tpu.memory_space<vmem>>, vector<1x128xf32>
    %c0_5 = arith.constant 0 : index
    %c0_6 = arith.constant 0 : index
    %3 = vector.load %arg5[%c0_5, %c0_6] : memref<1x128xf32, #tpu.memory_space<vmem>>, vector<1x128xf32>
    %c0_i32 = arith.constant 0 : i32
    %c16_i32 = arith.constant 16 : i32
    %4 = arith.muli %c0_i32, %c16_i32 : i32
    %5 = tpu.assume_multiple %4, 16 : i32
    %6 = arith.index_cast %5 : i32 to index
    %c0_7 = arith.constant 0 : index
    %7 = vector.load %arg1[%6, %c0_7] : memref<16x128xf32, #tpu.memory_space<vmem>>, vector<16x128xf32>
    %8 = arith.truncf %7 : vector<16x128xf32> to vector<16x128xbf16>
    %cst = arith.constant dense<0.000000e+00> : vector<16x128xf32>
    %9 = tpu.matmul %8, %0, %cst {dimension_numbers = #tpu.dot_dimension_numbers<[1], [0], [0], [1], [0, 0, 1, 1], [], []>} : vector<16x128xbf16>, vector<128x128xbf16>, vector<16x128xf32> -> vector<16x128xf32>
    %10 = vector.broadcast %2 : vector<1x128xf32> to vector<16x128xf32>
    %11 = arith.addf %9, %10 : vector<16x128xf32>
    %cst_8 = arith.constant 0.000000e+00 : f32
    %12 = vector.broadcast %cst_8 : f32 to vector<16x128xf32>
    %13 = arith.maximumf %11, %12 : vector<16x128xf32>
    %14 = arith.truncf %13 : vector<16x128xf32> to vector<16x128xbf16>
    %cst_9 = arith.constant dense<0.000000e+00> : vector<16x128xf32>
    %15 = tpu.matmul %14, %1, %cst_9 {dimension_numbers = #tpu.dot_dimension_numbers<[1], [0], [0], [1], [0, 0, 1, 1], [], []>} : vector<16x128xbf16>, vector<128x128xbf16>, vector<16x128xf32> -> vector<16x128xf32>
    %16 = vector.broadcast %3 : vector<1x128xf32> to vector<16x128xf32>
    %17 = arith.addf %15, %16 : vector<16x128xf32>
    %18 = arith.addf %7, %17 : vector<16x128xf32>
    %cst_10 = arith.constant 0.000000e+00 : f32
    %19 = vector.broadcast %cst_10 : f32 to vector<16x128xf32>
    %20 = arith.maximumf %18, %19 : vector<16x128xf32>
    %21 = arith.index_cast %5 : i32 to index
    %c0_11 = arith.constant 0 : index
    %22 = vector.load %arg6[%21, %c0_11] : memref<16x128xf32, #tpu.memory_space<vmem>>, vector<16x128xf32>
    tpu.vector_store %arg6[%21, %c0_11], %20 {strides = array<i32>} : memref<16x128xf32, #tpu.memory_space<vmem>>, vector<16x128xf32>,
    %c1_i32 = arith.constant 1 : i32
    return
  }
  func.func @transform_0(%arg0: i32) -> (i32, i32) {
    %c0_i32 = arith.constant 0 : i32
    %c0_i32_0 = arith.constant 0 : i32
    return %arg0, %c0_i32 : i32, i32
  }
  func.func @transform_1(%arg0: i32) -> (i32, i32) {
    %c0_i32 = arith.constant 0 : i32
    %c0_i32_0 = arith.constant 0 : i32
    %c0_i32_1 = arith.constant 0 : i32
    return %c0_i32, %c0_i32_0 : i32, i32
  }
  func.func @transform_2(%arg0: i32) -> (i32, i32) {
    %c0_i32 = arith.constant 0 : i32
    %c0_i32_0 = arith.constant 0 : i32
    %c0_i32_1 = arith.constant 0 : i32
    return %c0_i32, %c0_i32_0 : i32, i32
  }
  func.func @transform_3(%arg0: i32) -> (i32, i32) {
    %c0_i32 = arith.constant 0 : i32
    %c0_i32_0 = arith.constant 0 : i32
    %c0_i32_1 = arith.constant 0 : i32
    return %c0_i32, %c0_i32_0 : i32, i32
  }
  func.func @transform_4(%arg0: i32) -> (i32, i32) {
    %c0_i32 = arith.constant 0 : i32
    %c0_i32_0 = arith.constant 0 : i32
    %c0_i32_1 = arith.constant 0 : i32
    return %c0_i32, %c0_i32_0 : i32, i32
  }
  func.func @transform_5(%arg0: i32) -> (i32, i32) {
    %c0_i32 = arith.constant 0 : i32
    %c0_i32_0 = arith.constant 0 : i32
    return %arg0, %c0_i32 : i32, i32
  }
}

</mosaic_0001>

<llo_original>
// kernel: tpu_custom_call.1
$region0: #{tpu_custom_call.1}
  #allocation0 [shape = 'u32[]', space=smem, size = 0x4, offset = 0x4, fixed_abs, tag = 'smem constant byte address 0x4 - core index']
  #allocation1 [shape = 'u32[144,128]{1,0:T(1,128)}', space=vmem, size = 0x12000, scoped, tag = 'internal scratch']
  %s0 = inlined_call_operand.hbm [shape: f32[16,128], index: 0, kind: input, shape index: {}]
  %s1 = inlined_call_operand.hbm [shape: bf16[128,128], index: 1, kind: input, shape index: {}]
  %s2 = inlined_call_operand.vmem [shape: f32[1,128], index: 2, kind: input, shape index: {}]
  %s3 = inlined_call_operand.hbm [shape: bf16[128,128], index: 3, kind: input, shape index: {}]
  %s4 = inlined_call_operand.vmem [shape: f32[1,128], index: 4, kind: input, shape index: {}]
  %s5 = inlined_call_operand.hbm [shape: f32[16,128], index: 5, kind: output, shape index: {}]
  %s6 = sld [smem:[#allocation0]]
  $region42: #{tpu_custom_call.1} parent=0
    _
  %s8 = ssub.s32 1, %s6
  %s9 = scalar_select 0, %s8, %s6
  $region1: #{tpu_custom_call.1} parent=0
    #allocation2 [shape = 'u8[8192]{0}', space=vmem, size = 0x2000, scoped, tag = 'input window, operand 0, single buffered']
    #allocation3 [shape = 's32[1]{0}', space=sflag, size = 0x4, scoped, tag = 'scoped memory for tpu_custom_call.1']
    #allocation4 [shape = 's32[1]{0}', space=sflag, size = 0x4, scoped, tag = 'scoped memory for tpu_custom_call.1']
    #allocation5 [shape = 'u8[32768]{0}', space=vmem, size = 0x8000, scoped, tag = 'input window, operand 1, single buffered']
    #allocation6 [shape = 's32[1]{0}', space=sflag, size = 0x4, scoped, tag = 'scoped memory for tpu_custom_call.1']
    #allocation7 [shape = 'u8[32768]{0}', space=vmem, size = 0x8000, scoped, tag = 'input window, operand 3, single buffered']
    #allocation8 [shape = 'u8[8192]{0}', space=vmem, size = 0x2000, scoped, tag = 'output window, operand 0, single buffered']
    %10 = vsyncpa [#allocation3], 0
    %11 = vsyncpa [#allocation6], 0
    %12 = vsyncpa [#allocation4], 0
    // Predicated region
    $region2: #{tpu_custom_call.1} parent=1 // pred_check
      _
    $region3: #{tpu_custom_call.1} parent=1 // pred_check_branch
      %14 = sbr.rel (0) target = $region5
    $region4: #{tpu_custom_call.1} parent=1 // pred_region
      %s16 = ssub.s32 256, 256
      %17 = vsyncadd [#allocation3], %s16
      %s18 = sshll.u32 [#allocation2], 4
      %s19 = int_to_ptr.vmem [resolvable:$true] %s18
      %24 = dma.hbm_to_vmem [thread:$0]  %s0, 256, %s19, [#allocation3], 128, 128, 8
    $region5: #{tpu_custom_call.1} parent=1 // pred_fallthru
      _
    // Predicated region
    $region6: #{tpu_custom_call.1} parent=1 // pred_check
      _
    $region7: #{tpu_custom_call.1} parent=1 // pred_check_branch
      %26 = sbr.rel (0) target = $region9
    $region8: #{tpu_custom_call.1} parent=1 // pred_region
      %s28 = ssub.s32 1024, 1024
      %29 = vsyncadd [#allocation6], %s28
      %s30 = sshll.u32 [#allocation5], 4
      %s31 = int_to_ptr.vmem [resolvable:$true] %s30
      %36 = dma.hbm_to_vmem [thread:$0]  %s1, 1024, %s31, [#allocation6], 64, 64, 4
    $region9: #{tpu_custom_call.1} parent=1 // pred_fallthru
      _
    // Predicated region
    $region10: #{tpu_custom_call.1} parent=1 // pred_check
      _
    $region11: #{tpu_custom_call.1} parent=1 // pred_check_branch
      %38 = sbr.rel (0) target = $region13
    $region12: #{tpu_custom_call.1} parent=1 // pred_region
      _
    $region13: #{tpu_custom_call.1} parent=1 // pred_fallthru
      _
    // Predicated region
    $region14: #{tpu_custom_call.1} parent=1 // pred_check
      _
    $region15: #{tpu_custom_call.1} parent=1 // pred_check_branch
      %40 = sbr.rel (0) target = $region17
    $region16: #{tpu_custom_call.1} parent=1 // pred_region
      %s42 = ssub.s32 1024, 1024
      %43 = vsyncadd [#allocation6], %s42
      %s44 = sshll.u32 [#allocation7], 4
      %s45 = int_to_ptr.vmem [resolvable:$true] %s44
      %50 = dma.hbm_to_vmem [thread:$0]  %s3, 1024, %s45, [#allocation6], 64, 64, 4
    $region17: #{tpu_custom_call.1} parent=1 // pred_fallthru
      _
    // Predicated region
    $region18: #{tpu_custom_call.1} parent=1 // pred_check
      _
    $region19: #{tpu_custom_call.1} parent=1 // pred_check_branch
      %52 = sbr.rel (0) target = $region21
    $region20: #{tpu_custom_call.1} parent=1 // pred_region
      _
    $region21: #{tpu_custom_call.1} parent=1 // pred_fallthru
      _
    // Predicated region
    $region22: #{tpu_custom_call.1} parent=1 // pred_check
      _
    $region23: #{tpu_custom_call.1} parent=1 // pred_check_branch
      %54 = sbr.rel (0) target = $region25
    $region24: #{tpu_custom_call.1} parent=1 // pred_region
      %55 = dma.done [#allocation3], 256
    $region25: #{tpu_custom_call.1} parent=1 // pred_fallthru
      _
    // Predicated region
    $region26: #{tpu_custom_call.1} parent=1 // pred_check
      _
    $region27: #{tpu_custom_call.1} parent=1 // pred_check_branch
      %57 = sbr.rel (0) target = $region29
    $region28: #{tpu_custom_call.1} parent=1 // pred_region
      %58 = dma.done [#allocation6], 1024
    $region29: #{tpu_custom_call.1} parent=1 // pred_fallthru
      _
    // Predicated region
    $region30: #{tpu_custom_call.1} parent=1 // pred_check
      _
    $region31: #{tpu_custom_call.1} parent=1 // pred_check_branch
      %60 = sbr.rel (0) target = $region33
    $region32: #{tpu_custom_call.1} parent=1 // pred_region
      %61 = dma.done [#allocation6], 1024
    $region33: #{tpu_custom_call.1} parent=1 // pred_fallthru
      _
    %v63 = vld [vmem:[#allocation5] sm:$0xf]
    %v64 = vld [vmem:[#allocation5 + $0x4] sm:$0xf]
    %v65 = vld [vmem:[#allocation5 + $0x8] sm:$0xf]
    %v66 = vld [vmem:[#allocation5 + $0xc] sm:$0xf]
    %v67 = vld [vmem:[#allocation5 + $0x10] sm:$0xf]
    %v68 = vld [vmem:[#allocation5 + $0x14] sm:$0xf]
    %v69 = vld [vmem:[#allocation5 + $0x18] sm:$0xf]
    %v70 = vld [vmem:[#allocation5 + $0x1c] sm:$0xf]
    %v71 = vld [vmem:[#allocation5 + $0x20] sm:$0xf]
    %v72 = vld [vmem:[#allocation5 + $0x24] sm:$0xf]
    %v73 = vld [vmem:[#allocation5 + $0x28] sm:$0xf]
    %v74 = vld [vmem:[#allocation5 + $0x2c] sm:$0xf]
    %v75 = vld [vmem:[#allocation5 + $0x30] sm:$0xf]
    %v76 = vld [vmem:[#allocation5 + $0x34] sm:$0xf]
    %v77 = vld [vmem:[#allocation5 + $0x38] sm:$0xf]
    %v78 = vld [vmem:[#allocation5 + $0x3c] sm:$0xf]
    %v79 = vld [vmem:[#allocation7] sm:$0xf]
    %v80 = vld [vmem:[#allocation7 + $0x4] sm:$0xf]
    %v81 = vld [vmem:[#allocation7 + $0x8] sm:$0xf]
    %v82 = vld [vmem:[#allocation7 + $0xc] sm:$0xf]
    %v83 = vld [vmem:[#allocation7 + $0x10] sm:$0xf]
    %v84 = vld [vmem:[#allocation7 + $0x14] sm:$0xf]
    %v85 = vld [vmem:[#allocation7 + $0x18] sm:$0xf]
    %v86 = vld [vmem:[#allocation7 + $0x1c] sm:$0xf]
    %v87 = vld [vmem:[#allocation7 + $0x20] sm:$0xf]
    %v88 = vld [vmem:[#allocation7 + $0x24] sm:$0xf]
    %v89 = vld [vmem:[#allocation7 + $0x28] sm:$0xf]
    %v90 = vld [vmem:[#allocation7 + $0x2c] sm:$0xf]
    %v91 = vld [vmem:[#allocation7 + $0x30] sm:$0xf]
    %v92 = vld [vmem:[#allocation7 + $0x34] sm:$0xf]
    %v93 = vld [vmem:[#allocation7 + $0x38] sm:$0xf]
    %v94 = vld [vmem:[#allocation7 + $0x3c] sm:$0xf]
    %v95 = vld [vmem:[%s2] sm:$0x1]
    %v96 = vld [vmem:[%s4] sm:$0x1]
    %v97 = vld [vmem:[#allocation2] sm:$0xff]
    %v98 = vld [vmem:[#allocation2 + $0x8] sm:$0xff]
    %v99 = vpack.c.bf16 %v98, %v97
    %v101 = vlaneseq
    %v102 = vshrl.u32 %v101, 7
    %v103 = vsub.s32 0, %v102
    %v104 = vrot.slane %v95, %v103
    %v122 = vunpack.c.l.b16 %v63
    %v123 = vunpack.c.l.b16 %v64
    %v124 = vunpack.c.l.b16 %v65
    %v125 = vunpack.c.l.b16 %v66
    %v126 = vunpack.c.l.b16 %v67
    %v127 = vunpack.c.l.b16 %v68
    %v128 = vunpack.c.l.b16 %v69
    %v129 = vunpack.c.l.b16 %v70
    %v130 = vunpack.c.l.b16 %v71
    %v131 = vunpack.c.l.b16 %v72
    %v132 = vunpack.c.l.b16 %v73
    %v133 = vunpack.c.l.b16 %v74
    %v134 = vunpack.c.l.b16 %v75
    %v135 = vunpack.c.l.b16 %v76
    %v136 = vunpack.c.l.b16 %v77
    %v137 = vunpack.c.l.b16 %v78
    %v138 = vpack.c.b16 %v123, %v122
    %v139 = vpack.c.b16 %v125, %v124
    %v140 = vpack.c.b16 %v127, %v126
    %v141 = vpack.c.b16 %v129, %v128
    %v142 = vpack.c.b16 %v131, %v130
    %v143 = vpack.c.b16 %v133, %v132
    %v144 = vpack.c.b16 %v135, %v134
    %v145 = vpack.c.b16 %v137, %v136
    %154 = vmatprep.subr.bf16.mxu0 0
    %155 = vmatpush1.bf16.msra.mxu0 %v145
    %156 = vmatprep.subr.bf16.mxu0 0
    %157 = vmatpush1.bf16.msra.mxu0 %v144
    %158 = vmatprep.subr.bf16.mxu0 0
    %159 = vmatpush1.bf16.msra.mxu0 %v143
    %160 = vmatprep.subr.bf16.mxu0 0
    %161 = vmatpush1.bf16.msra.mxu0 %v142
    %162 = vmatprep.subr.bf16.mxu0 0
    %163 = vmatpush1.bf16.msra.mxu0 %v141
    %164 = vmatprep.subr.bf16.mxu0 0
    %165 = vmatpush1.bf16.msra.mxu0 %v140
    %166 = vmatprep.subr.bf16.mxu0 0
    %167 = vmatpush1.bf16.msra.mxu0 %v139
    %168 = vmatprep.subr.bf16.mxu0 0
    %169 = vmatpush1.bf16.msra.mxu0 %v138
    %170 = vmatprep.subr.bf16.mxu0 0
    %171 = vmatpush2.bf16.msra.mxu0 0
    %172 = vmatprep.subr.bf16.mxu0 0
    %173 = vmatpush2.bf16.msra.mxu0 0
    %174 = vmatprep.subr.bf16.mxu0 0
    %175 = vmatpush2.bf16.msra.mxu0 0
    %176 = vmatprep.subr.bf16.mxu0 0
    %177 = vmatpush2.bf16.msra.mxu0 0
    %178 = vmatprep.subr.bf16.mxu0 0
    %179 = vmatpush2.bf16.msra.mxu0 0
    %180 = vmatprep.subr.bf16.mxu0 0
    %181 = vmatpush2.bf16.msra.mxu0 0
    %182 = vmatprep.subr.bf16.mxu0 0
    %183 = vmatpush2.bf16.msra.mxu0 0
    %184 = vmatprep.subr.bf16.mxu0 0
    %185 = vmatpush2.bf16.msra.mxu0 0
    %186 = vmatprep.mubr.bf16.mxu0 0
    %187 = vmatmul.mubr.bf16.gmra.mxu0 %v99
    %v188 = vpop.f32.mrf.mxu0
    %v189 = vadd.f32 %v104, %v188
    %v190 = vpop.f32.mrf.mxu0
    %v191 = vpop.f32.mrf.mxu0
    %v192 = vadd.f32 %v104, %v191
    %v193 = vpop.f32.mrf.mxu0
    %194 = vdwg.mxu0
    %v195 = vmax.f32 %v189, 0.0
    %v196 = vmax.f32 %v192, 0.0
    %v197 = vpack.c.bf16 %v196, %v195
    %v199 = vlaneseq
    %v200 = vshrl.u32 %v199, 7
    %v201 = vsub.s32 0, %v200
    %v202 = vrot.slane %v96, %v201
    %v220 = vunpack.c.l.b16 %v79
    %v221 = vunpack.c.l.b16 %v80
    %v222 = vunpack.c.l.b16 %v81
    %v223 = vunpack.c.l.b16 %v82
    %v224 = vunpack.c.l.b16 %v83
    %v225 = vunpack.c.l.b16 %v84
    %v226 = vunpack.c.l.b16 %v85
    %v227 = vunpack.c.l.b16 %v86
    %v228 = vunpack.c.l.b16 %v87
    %v229 = vunpack.c.l.b16 %v88
    %v230 = vunpack.c.l.b16 %v89
    %v231 = vunpack.c.l.b16 %v90
    %v232 = vunpack.c.l.b16 %v91
    %v233 = vunpack.c.l.b16 %v92
    %v234 = vunpack.c.l.b16 %v93
    %v235 = vunpack.c.l.b16 %v94
    %v236 = vpack.c.b16 %v221, %v220
    %v237 = vpack.c.b16 %v223, %v222
    %v238 = vpack.c.b16 %v225, %v224
    %v239 = vpack.c.b16 %v227, %v226
    %v240 = vpack.c.b16 %v229, %v228
    %v241 = vpack.c.b16 %v231, %v230
    %v242 = vpack.c.b16 %v233, %v232
    %v243 = vpack.c.b16 %v235, %v234
    %252 = vmatprep.subr.bf16.mxu0 0
    %253 = vmatpush1.bf16.msra.mxu0 %v243
    %254 = vmatprep.subr.bf16.mxu0 0
    %255 = vmatpush1.bf16.msra.mxu0 %v242
    %256 = vmatprep.subr.bf16.mxu0 0
    %257 = vmatpush1.bf16.msra.mxu0 %v241
    %258 = vmatprep.subr.bf16.mxu0 0
    %259 = vmatpush1.bf16.msra.mxu0 %v240
    %260 = vmatprep.subr.bf16.mxu0 0
    %261 = vmatpush1.bf16.msra.mxu0 %v239
    %262 = vmatprep.subr.bf16.mxu0 0
    %263 = vmatpush1.bf16.msra.mxu0 %v238
    %264 = vmatprep.subr.bf16.mxu0 0
    %265 = vmatpush1.bf16.msra.mxu0 %v237
    %266 = vmatprep.subr.bf16.mxu0 0
    %267 = vmatpush1.bf16.msra.mxu0 %v236
    %268 = vmatprep.subr.bf16.mxu0 0
    %269 = vmatpush2.bf16.msra.mxu0 0
    %270 = vmatprep.subr.bf16.mxu0 0
    %271 = vmatpush2.bf16.msra.mxu0 0
    %272 = vmatprep.subr.bf16.mxu0 0
    %273 = vmatpush2.bf16.msra.mxu0 0
    %274 = vmatprep.subr.bf16.mxu0 0
    %275 = vmatpush2.bf16.msra.mxu0 0
    %276 = vmatprep.subr.bf16.mxu0 0
    %277 = vmatpush2.bf16.msra.mxu0 0
    %278 = vmatprep.subr.bf16.mxu0 0
    %279 = vmatpush2.bf16.msra.mxu0 0
    %280 = vmatprep.subr.bf16.mxu0 0
    %281 = vmatpush2.bf16.msra.mxu0 0
    %282 = vmatprep.subr.bf16.mxu0 0
    %283 = vmatpush2.bf16.msra.mxu0 0
    %284 = vmatprep.mubr.bf16.mxu0 0
    %285 = vmatmul.mubr.bf16.gmra.mxu0 %v197
    %v286 = vpop.f32.mrf.mxu0
    %v287 = vadd.f32 %v202, %v286
    %v288 = vpop.f32.mrf.mxu0
    %v289 = vpop.f32.mrf.mxu0
    %v290 = vadd.f32 %v202, %v289
    %v291 = vpop.f32.mrf.mxu0
    %292 = vdwg.mxu0
    %v293 = vadd.f32 %v97, %v287
    %v294 = vadd.f32 %v98, %v290
    %v295 = vmax.f32 %v293, 0.0
    %v296 = vmax.f32 %v294, 0.0
    %297 = vst [vmem:[#allocation8] sm:$0xff] %v295
    %298 = vst [vmem:[#allocation8 + $0x8] sm:$0xff] %v296
    // Predicated region
    $region34: #{tpu_custom_call.1} parent=1 // pred_check
      _
    $region35: #{tpu_custom_call.1} parent=1 // pred_check_branch
      %300 = sbr.rel (0) target = $region37
    $region36: #{tpu_custom_call.1} parent=1 // pred_region
      %s302 = ssub.s32 256, 256
      %303 = vsyncadd [#allocation4], %s302
      %s304 = sshll.u32 [#allocation8], 4
      %s305 = int_to_ptr.vmem [resolvable:$true] %s304
      %310 = dma.vmem_to_hbm [thread:$0]  %s305, 256, %s5, [#allocation4], 128, 128, 8
    $region37: #{tpu_custom_call.1} parent=1 // pred_fallthru
      _
    // Predicated region
    $region38: #{tpu_custom_call.1} parent=1 // pred_check
      _
    $region39: #{tpu_custom_call.1} parent=1 // pred_check_branch
      %312 = sbr.rel (0) target = $region41
    $region40: #{tpu_custom_call.1} parent=1 // pred_region
      %313 = dma.done [#allocation4], 256
    $region41: #{tpu_custom_call.1} parent=1 // pred_fallthru
      _
    %314 = vsyncpa [#allocation3], 1
    %315 = vsyncpa [#allocation6], 1
    %316 = vsyncpa [#allocation4], 1

// kernel: tpu_custom_call.1
$region0: #{tpu_custom_call.1}
  #allocation0 [shape = 'u32[]', space=smem, size = 0x4, offset = 0x4, fixed_abs, tag = 'smem constant byte address 0x4 - core index']
  #allocation1 [shape = 'u32[144,128]{1,0:T(1,128)}', space=vmem, size = 0x12000, scoped, tag = 'internal scratch']
  %s0 = inlined_call_operand.hbm [shape: f32[16,128], index: 0, kind: input, shape index: {}]
  %s1 = inlined_call_operand.hbm [shape: bf16[128,128], index: 1, kind: input, shape index: {}]
  %s2 = inlined_call_operand.vmem [shape: f32[1,128], index: 2, kind: input, shape index: {}]
  %s3 = inlined_call_operand.hbm [shape: bf16[128,128], index: 3, kind: input, shape index: {}]
  %s4 = inlined_call_operand.vmem [shape: f32[1,128], index: 4, kind: input, shape index: {}]
  %s5 = inlined_call_operand.hbm [shape: f32[16,128], index: 5, kind: output, shape index: {}]
  %s6 = sld [smem:[#allocation0]]
  $region42: #{tpu_custom_call.1} parent=0
    _
  %s8 = ssub.s32 1, %s6
  %s9 = scalar_select 0, %s8, %s6
  $region1: #{tpu_custom_call.1} parent=0
    #allocation2 [shape = 'u8[8192]{0}', space=vmem, size = 0x2000, scoped, tag = 'input window, operand 0, single buffered']
    #allocation3 [shape = 's32[1]{0}', space=sflag, size = 0x4, scoped, tag = 'scoped memory for tpu_custom_call.1']
    #allocation4 [shape = 's32[1]{0}', space=sflag, size = 0x4, scoped, tag = 'scoped memory for tpu_custom_call.1']
    #allocation5 [shape = 'u8[32768]{0}', space=vmem, size = 0x8000, scoped, tag = 'input window, operand 1, single buffered']
    #allocation6 [shape = 's32[1]{0}', space=sflag, size = 0x4, scoped, tag = 'scoped memory for tpu_custom_call.1']
    #allocation7 [shape = 'u8[32768]{0}', space=vmem, size = 0x8000, scoped, tag = 'input window, operand 3, single buffered']
    #allocation8 [shape = 'u8[8192]{0}', space=vmem, size = 0x2000, scoped, tag = 'output window, operand 0, single buffered']
    %10 = vsyncpa [#allocation3], 0
    %11 = vsyncpa [#allocation6], 0
    %12 = vsyncpa [#allocation4], 0
    // Predicated region
    $region2: #{tpu_custom_call.1} parent=1 // pred_check
      _
    $region3: #{tpu_custom_call.1} parent=1 // pred_check_branch
      %14 = sbr.rel (0) target = $region5
    $region4: #{tpu_custom_call.1} parent=1 // pred_region
      %s16 = ssub.s32 256, 256
      %17 = vsyncadd [#allocation3], %s16
      %s18 = sshll.u32 [#allocation2], 4
      %s19 = int_to_ptr.vmem [resolvable:$true] %s18
      %24 = dma.hbm_to_vmem [thread:$0]  %s0, 256, %s19, [#allocation3], 128, 128, 8
    $region5: #{tpu_custom_call.1} parent=1 // pred_fallthru
      _
    // Predicated region
    $region6: #{tpu_custom_call.1} parent=1 // pred_check
      _
    $region7: #{tpu_custom_call.1} parent=1 // pred_check_branch
      %26 = sbr.rel (0) target = $region9
    $region8: #{tpu_custom_call.1} parent=1 // pred_region
      %s28 = ssub.s32 1024, 1024
      %29 = vsyncadd [#allocation6], %s28
      %s30 = sshll.u32 [#allocation5], 4
      %s31 = int_to_ptr.vmem [resolvable:$true] %s30
      %36 = dma.hbm_to_vmem [thread:$0]  %s1, 1024, %s31, [#allocation6], 64, 64, 4
    $region9: #{tpu_custom_call.1} parent=1 // pred_fallthru
      _
    // Predicated region
    $region10: #{tpu_custom_call.1} parent=1 // pred_check
      _
    $region11: #{tpu_custom_call.1} parent=1 // pred_check_branch
      %38 = sbr.rel (0) target = $region13
    $region12: #{tpu_custom_call.1} parent=1 // pred_region
      _
    $region13: #{tpu_custom_call.1} parent=1 // pred_fallthru
      _
    // Predicated region
    $region14: #{tpu_custom_call.1} parent=1 // pred_check
      _
    $region15: #{tpu_custom_call.1} parent=1 // pred_check_branch
      %40 = sbr.rel (0) target = $region17
    $region16: #{tpu_custom_call.1} parent=1 // pred_region
      %s42 = ssub.s32 1024, 1024
      %43 = vsyncadd [#allocation6], %s42
      %s44 = sshll.u32 [#allocation7], 4
      %s45 = int_to_ptr.vmem [resolvable:$true] %s44
      %50 = dma.hbm_to_vmem [thread:$0]  %s3, 1024, %s45, [#allocation6], 64, 64, 4
    $region17: #{tpu_custom_call.1} parent=1 // pred_fallthru
      _
    // Predicated region
    $region18: #{tpu_custom_call.1} parent=1 // pred_check
      _
    $region19: #{tpu_custom_call.1} parent=1 // pred_check_branch
      %52 = sbr.rel (0) target = $region21
    $region20: #{tpu_custom_call.1} parent=1 // pred_region
      _
    $region21: #{tpu_custom_call.1} parent=1 // pred_fallthru
      _
    // Predicated region
    $region22: #{tpu_custom_call.1} parent=1 // pred_check
      _
    $region23: #{tpu_custom_call.1} parent=1 // pred_check_branch
      %54 = sbr.rel (0) target = $region25
    $region24: #{tpu_custom_call.1} parent=1 // pred_region
      %55 = dma.done [#allocation3], 256
    $region25: #{tpu_custom_call.1} parent=1 // pred_fallthru
      _
    // Predicated region
    $region26: #{tpu_custom_call.1} parent=1 // pred_check
      _
    $region27: #{tpu_custom_call.1} parent=1 // pred_check_branch
      %57 = sbr.rel (0) target = $region29
    $region28: #{tpu_custom_call.1} parent=1 // pred_region
      %58 = dma.done [#allocation6], 1024
    $region29: #{tpu_custom_call.1} parent=1 // pred_fallthru
      _
    // Predicated region
    $region30: #{tpu_custom_call.1} parent=1 // pred_check
      _
    $region31: #{tpu_custom_call.1} parent=1 // pred_check_branch
      %60 = sbr.rel (0) target = $region33
    $region32: #{tpu_custom_call.1} parent=1 // pred_region
      %61 = dma.done [#allocation6], 1024
    $region33: #{tpu_custom_call.1} parent=1 // pred_fallthru
      _
    %v63 = vld [vmem:[#allocation5] sm:$0xf]
    %v64 = vld [vmem:[#allocation5 + $0x4] sm:$0xf]
    %v65 = vld [vmem:[#allocation5 + $0x8] sm:$0xf]
    %v66 = vld [vmem:[#allocation5 + $0xc] sm:$0xf]
    %v67 = vld [vmem:[#allocation5 + $0x10] sm:$0xf]
    %v68 = vld [vmem:[#allocation5 + $0x14] sm:$0xf]
    %v69 = vld [vmem:[#allocation5 + $0x18] sm:$0xf]
    %v70 = vld [vmem:[#allocation5 + $0x1c] sm:$0xf]
    %v71 = vld [vmem:[#allocation5 + $0x20] sm:$0xf]
    %v72 = vld [vmem:[#allocation5 + $0x24] sm:$0xf]
    %v73 = vld [vmem:[#allocation5 + $0x28] sm:$0xf]
    %v74 = vld [vmem:[#allocation5 + $0x2c] sm:$0xf]
    %v75 = vld [vmem:[#allocation5 + $0x30] sm:$0xf]
    %v76 = vld [vmem:[#allocation5 + $0x34] sm:$0xf]
    %v77 = vld [vmem:[#allocation5 + $0x38] sm:$0xf]
    %v78 = vld [vmem:[#allocation5 + $0x3c] sm:$0xf]
    %v79 = vld [vmem:[#allocation7] sm:$0xf]
    %v80 = vld [vmem:[#allocation7 + $0x4] sm:$0xf]
    %v81 = vld [vmem:[#allocation7 + $0x8] sm:$0xf]
    %v82 = vld [vmem:[#allocation7 + $0xc] sm:$0xf]
    %v83 = vld [vmem:[#allocation7 + $0x10] sm:$0xf]
    %v84 = vld [vmem:[#allocation7 + $0x14] sm:$0xf]
    %v85 = vld [vmem:[#allocation7 + $0x18] sm:$0xf]
    %v86 = vld [vmem:[#allocation7 + $0x1c] sm:$0xf]
    %v87 = vld [vmem:[#allocation7 + $0x20] sm:$0xf]
    %v88 = vld [vmem:[#allocation7 + $0x24] sm:$0xf]
    %v89 = vld [vmem:[#allocation7 + $0x28] sm:$0xf]
    %v90 = vld [vmem:[#allocation7 + $0x2c] sm:$0xf]
    %v91 = vld [vmem:[#allocation7 + $0x30] sm:$0xf]
    %v92 = vld [vmem:[#allocation7 + $0x34] sm:$0xf]
    %v93 = vld [vmem:[#allocation7 + $0x38] sm:$0xf]
    %v94 = vld [vmem:[#allocation7 + $0x3c] sm:$0xf]
    %v95 = vld [vmem:[%s2] sm:$0x1]
    %v96 = vld [vmem:[%s4] sm:$0x1]
    %v97 = vld [vmem:[#allocation2] sm:$0xff]
    %v98 = vld [vmem:[#allocation2 + $0x8] sm:$0xff]
    %v99 = vpack.c.bf16 %v98, %v97
    %v101 = vlaneseq
    %v102 = vshrl.u32 %v101, 7
    %v103 = vsub.s32 0, %v102
    %v104 = vrot.slane %v95, %v103
    %v122 = vunpack.c.l.b16 %v63
    %v123 = vunpack.c.l.b16 %v64
    %v124 = vunpack.c.l.b16 %v65
    %v125 = vunpack.c.l.b16 %v66
    %v126 = vunpack.c.l.b16 %v67
    %v127 = vunpack.c.l.b16 %v68
    %v128 = vunpack.c.l.b16 %v69
    %v129 = vunpack.c.l.b16 %v70
    %v130 = vunpack.c.l.b16 %v71
    %v131 = vunpack.c.l.b16 %v72
    %v132 = vunpack.c.l.b16 %v73
    %v133 = vunpack.c.l.b16 %v74
    %v134 = vunpack.c.l.b16 %v75
    %v135 = vunpack.c.l.b16 %v76
    %v136 = vunpack.c.l.b16 %v77
    %v137 = vunpack.c.l.b16 %v78
    %v138 = vpack.c.b16 %v123, %v122
    %v139 = vpack.c.b16 %v125, %v124
    %v140 = vpack.c.b16 %v127, %v126
    %v141 = vpack.c.b16 %v129, %v128
    %v142 = vpack.c.b16 %v131, %v130
    %v143 = vpack.c.b16 %v133, %v132
    %v144 = vpack.c.b16 %v135, %v134
    %v145 = vpack.c.b16 %v137, %v136
    %154 = vmatprep.subr.bf16.mxu0 0
    %155 = vmatpush1.bf16.msra.mxu0 %v145
    %156 = vmatprep.subr.bf16.mxu0 0
    %157 = vmatpush1.bf16.msra.mxu0 %v144
    %158 = vmatprep.subr.bf16.mxu0 0
    %159 = vmatpush1.bf16.msra.mxu0 %v143
    %160 = vmatprep.subr.bf16.mxu0 0
    %161 = vmatpush1.bf16.msra.mxu0 %v142
    %162 = vmatprep.subr.bf16.mxu0 0
    %163 = vmatpush1.bf16.msra.mxu0 %v141
    %164 = vmatprep.subr.bf16.mxu0 0
    %165 = vmatpush1.bf16.msra.mxu0 %v140
    %166 = vmatprep.subr.bf16.mxu0 0
    %167 = vmatpush1.bf16.msra.mxu0 %v139
    %168 = vmatprep.subr.bf16.mxu0 0
    %169 = vmatpush1.bf16.msra.mxu0 %v138
    %170 = vmatprep.subr.bf16.mxu0 0
    %171 = vmatpush2.bf16.msra.mxu0 0
    %172 = vmatprep.subr.bf16.mxu0 0
    %173 = vmatpush2.bf16.msra.mxu0 0
    %174 = vmatprep.subr.bf16.mxu0 0
    %175 = vmatpush2.bf16.msra.mxu0 0
    %176 = vmatprep.subr.bf16.mxu0 0
    %177 = vmatpush2.bf16.msra.mxu0 0
    %178 = vmatprep.subr.bf16.mxu0 0
    %179 = vmatpush2.bf16.msra.mxu0 0
    %180 = vmatprep.subr.bf16.mxu0 0
    %181 = vmatpush2.bf16.msra.mxu0 0
    %182 = vmatprep.subr.bf16.mxu0 0
    %183 = vmatpush2.bf16.msra.mxu0 0
    %184 = vmatprep.subr.bf16.mxu0 0
    %185 = vmatpush2.bf16.msra.mxu0 0
    %186 = vmatprep.mubr.bf16.mxu0 0
    %187 = vmatmul.mubr.bf16.gmra.mxu0 %v99
    %v188 = vpop.f32.mrf.mxu0
    %v189 = vadd.f32 %v104, %v188
    %v190 = vpop.f32.mrf.mxu0
    %v191 = vpop.f32.mrf.mxu0
    %v192 = vadd.f32 %v104, %v191
    %v193 = vpop.f32.mrf.mxu0
    %194 = vdwg.mxu0
    %v195 = vmax.f32 %v189, 0.0
    %v196 = vmax.f32 %v192, 0.0
    %v197 = vpack.c.bf16 %v196, %v195
    %v199 = vlaneseq
    %v200 = vshrl.u32 %v199, 7
    %v201 = vsub.s32 0, %v200
    %v202 = vrot.slane %v96, %v201
    %v220 = vunpack.c.l.b16 %v79
    %v221 = vunpack.c.l.b16 %v80
    %v222 = vunpack.c.l.b16 %v81
    %v223 = vunpack.c.l.b16 %v82
    %v224 = vunpack.c.l.b16 %v83
    %v225 = vunpack.c.l.b16 %v84
    %v226 = vunpack.c.l.b16 %v85
    %v227 = vunpack.c.l.b16 %v86
    %v228 = vunpack.c.l.b16 %v87
    %v229 = vunpack.c.l.b16 %v88
    %v230 = vunpack.c.l.b16 %v89
    %v231 = vunpack.c.l.b16 %v90
    %v232 = vunpack.c.l.b16 %v91
    %v233 = vunpack.c.l.b16 %v92
    %v234 = vunpack.c.l.b16 %v93
    %v235 = vunpack.c.l.b16 %v94
    %v236 = vpack.c.b16 %v221, %v220
    %v237 = vpack.c.b16 %v223, %v222
    %v238 = vpack.c.b16 %v225, %v224
    %v239 = vpack.c.b16 %v227, %v226
    %v240 = vpack.c.b16 %v229, %v228
    %v241 = vpack.c.b16 %v231, %v230
    %v242 = vpack.c.b16 %v233, %v232
    %v243 = vpack.c.b16 %v235, %v234
    %252 = vmatprep.subr.bf16.mxu0 0
    %253 = vmatpush1.bf16.msra.mxu0 %v243
    %254 = vmatprep.subr.bf16.mxu0 0
    %255 = vmatpush1.bf16.msra.mxu0 %v242
    %256 = vmatprep.subr.bf16.mxu0 0
    %257 = vmatpush1.bf16.msra.mxu0 %v241
    %258 = vmatprep.subr.bf16.mxu0 0
    %259 = vmatpush1.bf16.msra.mxu0 %v240
    %260 = vmatprep.subr.bf16.mxu0 0
    %261 = vmatpush1.bf16.msra.mxu0 %v239
    %262 = vmatprep.subr.bf16.mxu0 0
    %263 = vmatpush1.bf16.msra.mxu0 %v238
    %264 = vmatprep.subr.bf16.mxu0 0
    %265 = vmatpush1.bf16.msra.mxu0 %v237
    %266 = vmatprep.subr.bf16.mxu0 0
    %267 = vmatpush1.bf16.msra.mxu0 %v236
    %268 = vmatprep.subr.bf16.mxu0 0
    %269 = vmatpush2.bf16.msra.mxu0 0
    %270 = vmatprep.subr.bf16.mxu0 0
    %271 = vmatpush2.bf16.msra.mxu0 0
    %272 = vmatprep.subr.bf16.mxu0 0
    %273 = vmatpush2.bf16.msra.mxu0 0
    %274 = vmatprep.subr.bf16.mxu0 0
    %275 = vmatpush2.bf16.msra.mxu0 0
    %276 = vmatprep.subr.bf16.mxu0 0
    %277 = vmatpush2.bf16.msra.mxu0 0
    %278 = vmatprep.subr.bf16.mxu0 0
    %279 = vmatpush2.bf16.msra.mxu0 0
    %280 = vmatprep.subr.bf16.mxu0 0
    %281 = vmatpush2.bf16.msra.mxu0 0
    %282 = vmatprep.subr.bf16.mxu0 0
    %283 = vmatpush2.bf16.msra.mxu0 0
    %284 = vmatprep.mubr.bf16.mxu0 0
    %285 = vmatmul.mubr.bf16.gmra.mxu0 %v197
    %v286 = vpop.f32.mrf.mxu0
    %v287 = vadd.f32 %v202, %v286
    %v288 = vpop.f32.mrf.mxu0
    %v289 = vpop.f32.mrf.mxu0
    %v290 = vadd.f32 %v202, %v289
    %v291 = vpop.f32.mrf.mxu0
    %292 = vdwg.mxu0
    %v293 = vadd.f32 %v97, %v287
    %v294 = vadd.f32 %v98, %v290
    %v295 = vmax.f32 %v293, 0.0
    %v296 = vmax.f32 %v294, 0.0
    %297 = vst [vmem:[#allocation8] sm:$0xff] %v295
    %298 = vst [vmem:[#allocation8 + $0x8] sm:$0xff] %v296
    // Predicated region
    $region34: #{tpu_custom_call.1} parent=1 // pred_check
      _
    $region35: #{tpu_custom_call.1} parent=1 // pred_check_branch
      %300 = sbr.rel (0) target = $region37
    $region36: #{tpu_custom_call.1} parent=1 // pred_region
      %s302 = ssub.s32 256, 256
      %303 = vsyncadd [#allocation4], %s302
      %s304 = sshll.u32 [#allocation8], 4
      %s305 = int_to_ptr.vmem [resolvable:$true] %s304
      %310 = dma.vmem_to_hbm [thread:$0]  %s305, 256, %s5, [#allocation4], 128, 128, 8
    $region37: #{tpu_custom_call.1} parent=1 // pred_fallthru
      _
    // Predicated region
    $region38: #{tpu_custom_call.1} parent=1 // pred_check
      _
    $region39: #{tpu_custom_call.1} parent=1 // pred_check_branch
      %312 = sbr.rel (0) target = $region41
    $region40: #{tpu_custom_call.1} parent=1 // pred_region
      %313 = dma.done [#allocation4], 256
    $region41: #{tpu_custom_call.1} parent=1 // pred_fallthru
      _
    %314 = vsyncpa [#allocation3], 1
    %315 = vsyncpa [#allocation6], 1
    %316 = vsyncpa [#allocation4], 1

</llo_original>
